<compile_context>
chip_gen: v6e
topology: v6e:2x2x1
jax: 0.10.0
libtpu: 0.0.40
codegen_flags: <defaults>
</compile_context>

<pallas_src>
import jax
import jax.numpy as jnp
from jax.experimental import pallas as pl
from jax.experimental.pallas import tpu as pltpu


def _pick_hw_chunk(hw, max_chunk=2048):
    """Largest divisor of hw <= max_chunk (prefer 128-aligned) for chunked pooling."""
    if hw <= max_chunk:
        return hw
    for c in range(max_chunk, 0, -1):
        if hw % c == 0 and c % 128 == 0:
            return c
    for c in range(max_chunk, 0, -1):
        if hw % c == 0:
            return c
    return hw


def _per_sample_vmem_bytes(c_in, hw, f, hw_chunk):
    # f32: x block (double-buffered) + conv/ReLU chunk intermediate + pooled
    # accumulator/out + output blocks (double-buffered).
    return 4 * (2 * c_in * hw + f * hw_chunk + 2 * f + 2 * (f + 1))


def _weight_vmem_bytes(c_in, f, f4):
    return 4 * (f * c_in + f + f * f4 + 2 * f4 + 1)


def _pick_tb(n, c_in, hw, f, f4, hw_chunk, vmem_budget_bytes):
    """Batch-tile size from a VMEM budget; TB is a multiple of 8 (or the full batch)."""
    per_sample = _per_sample_vmem_bytes(c_in, hw, f, hw_chunk)
    cap = (vmem_budget_bytes - 2 * _weight_vmem_bytes(c_in, f, f4)) // max(per_sample, 1)
    cap = int(max(8, min(128, (cap // 8) * 8)))
    if n <= cap:
        if n >= 16:
            # Split into >=2 tiles so v7x's two TensorCores both get work
            # (measured-neutral on single-TC v5e/v6e).
            half = -(-n // 2)
            return min(cap, -(-half // 8) * 8)
        return n          # tiny batch: single grid step, block == full (padded) dim
    return cap            # n > cap  =>  grid has >= 2 steps automatically


def _make_kernel(cin, hw, hw_chunk):
    n_chunks = hw // hw_chunk

    def kernel(x_ref, wenc_t_ref, benc_ref, w1_ref, b1_ref, w2_ref, b2_ref,
               cl_ref, feat_ref):
        # x_ref:      (TB, Cin*HW)  flat row-major NCHW (lane dim = HW, free reshape)
        # wenc_t_ref: (F, Cin)      encoder 1x1-conv weight (transposed)
        # benc_ref:   (F, 1)        encoder bias (column)
        # w1_ref:     (F, F4)   b1_ref: (1, F4)
        # w2_ref:     (1, F4)       last Linear weight row   b2_ref: (1, 1)
        # cl_ref:     (TB, 1)   feat_ref: (TB, F)
        wt = wenc_t_ref[...]                              # (F, Cin)
        benc = benc_ref[...]                              # (F, 1)
        tb, f = feat_ref.shape

        # --- encoder stand-in (1x1 conv + ReLU) + AdaptiveAvgPool2d(1), chunked ----
        # K = Cin is tiny (4): an MXU matmul would use <2% of the contraction depth,
        # so the conv runs as Cin unrolled VPU broadcast-FMAs.  HW is processed in
        # static chunks so the (TB, F, HW_chunk) intermediate stays bounded; the
        # pooled sum accumulates in f32 and is divided by the TRUE HW at the end.
        pooled = jnp.zeros((tb, f), jnp.float32)
        for k in range(n_chunks):                         # static unroll over chunks
            base = k * hw_chunk
            xc = x_ref[:, base:base + hw_chunk]           # (TB, HWC) static ref view
            acc = wt[:, 0:1] * xc[:, None, :]             # (F,1)*(TB,1,HWC)->(TB,F,HWC)
            for c in range(1, cin):                       # static unroll, Cin is small
                xc = x_ref[:, c * hw + base:c * hw + base + hw_chunk]
                acc = acc + wt[:, c:c + 1] * xc[:, None, :]
            feat = jnp.maximum(acc + benc, 0.0)           # (TB, F, HWC)
            pooled = pooled + jnp.sum(feat, axis=-1)      # XLU lane reduce -> (TB, F)
        pooled = pooled * (1.0 / float(hw))               # mean over the true HW
        feat_ref[...] = pooled.astype(feat_ref.dtype)     # single whole-block store

        # --- classifier: Linear(F, F//4) -> ReLU -> (Dropout=id) -> Linear(F//4, 1) -
        h = jnp.dot(pooled, w1_ref[...], preferred_element_type=jnp.float32)  # (TB,F4)
        h = jnp.maximum(h + b1_ref[...], 0.0)
        # Tail Linear(F4, 1) as VPU multiply + lane reduce (avoids an N=1 MXU matmul).
        cl = jnp.sum(h * w2_ref[...], axis=-1, keepdims=True) + b2_ref[...]   # (TB,1)
        cl_ref[...] = cl.astype(cl_ref.dtype)

    return kernel


def dafl_fas_mixup_forward(x_nchw, params, *, vmem_budget_bytes=24 << 20):
    """x_nchw: (N, C_in, H, W) float32.  Returns (cl_out (N,1), pooled (N,F))."""
    N, C_in, H, W = x_nchw.shape
    HW = H * W
    wenc, benc, w1, b1, w2, b2 = (params[k] for k in
                                  ("wenc", "benc", "w1", "b1", "w2", "b2"))
    F = wenc.shape[1]
    F4 = w1.shape[1]

    HWC = _pick_hw_chunk(HW)
    TB = _pick_tb(N, C_in, HW, F, F4, HWC, vmem_budget_bytes)
    N_pad = -(-N // TB) * TB

    # FREE flatten of row-major NCHW -> (N, Cin*HW): no transpose, no extra HBM pass,
    # full-sublane lane-dense x tiles (Cin*HW is a multiple of 128 here).  Channels
    # are recovered in-kernel with zero-cost static ref slices.
    x_flat = x_nchw.reshape(N, C_in * HW)
    if N_pad != N:
        x_flat = jnp.pad(x_flat, ((0, N_pad - N), (0, 0)))

    # Tiny weight re-layouts (negligible HBM): F on sublanes for the encoder FMA,
    # w2 as a lane row for the VPU tail.
    wenc_t = wenc.T                    # (F, Cin)
    benc_c = benc.reshape(F, 1)        # (F, 1)
    w2_row = w2.reshape(1, F4)         # (1, F4)
    b2_s = b2.reshape(1, 1)            # (1, 1)

    # Explicit scoped-VMEM limit from the actual tiles (2x headroom), with a safe
    # floor and clamped below v7x's 64 MiB physical VMEM.
    vmem_used = (2 * _weight_vmem_bytes(C_in, F, F4)
                 + TB * _per_sample_vmem_bytes(C_in, HW, F, HWC))
    vmem_limit = int(min(max(2 * vmem_used, 16 << 20), 48 << 20))

    grid_spec = pltpu.PrefetchScalarGridSpec(
        num_scalar_prefetch=0,
        grid=(N_pad // TB,),
        in_specs=[
            pl.BlockSpec((TB, C_in * HW), lambda i: (i, 0)),
            pl.BlockSpec((F, C_in),       lambda i: (0, 0)),
            pl.BlockSpec((F, 1),          lambda i: (0, 0)),
            pl.BlockSpec((F, F4),         lambda i: (0, 0)),
            pl.BlockSpec((1, F4),         lambda i: (0, 0)),
            pl.BlockSpec((1, F4),         lambda i: (0, 0)),
            pl.BlockSpec((1, 1),          lambda i: (0, 0)),
        ],
        out_specs=[
            pl.BlockSpec((TB, 1), lambda i: (i, 0)),   # cl_out
            pl.BlockSpec((TB, F), lambda i: (i, 0)),   # pooled features
        ],
    )

    cl_out, pooled = pl.pallas_call(
        _make_kernel(C_in, HW, HWC),
        out_shape=(
            jax.ShapeDtypeStruct((N_pad, 1), jnp.float32),
            jax.ShapeDtypeStruct((N_pad, F), jnp.float32),
        ),
        grid_spec=grid_spec,
        compiler_params=pltpu.CompilerParams(
            # Batch tiles are fully independent: shard across both TensorCores on
            # v7x (neutral on single-TC v5e/v6e).
            dimension_semantics=("parallel",),
            vmem_limit_bytes=vmem_limit),
    )(x_flat, wenc_t, benc_c, w1, b1, w2_row, b2_s)

    if N_pad != N:
        cl_out = cl_out[:N]
        pooled = pooled[:N]
    return cl_out, pooled


def init_params(key, c_in, bottleneck_features):
    """Deterministic parameter init mirroring the module shapes."""
    F = bottleneck_features
    F4 = F // 4
    ks = jax.random.split(key, 6)
    scale = 0.05
    return {
        # encoder stand-in: 1x1 conv (C_in -> F)
        "wenc": scale * jax.random.normal(ks[0], (c_in, F), jnp.float32),
        "benc": scale * jax.random.normal(ks[1], (1, F), jnp.float32),
        # classifier: Linear(F, F//4), Linear(F//4, 1)
        "w1": scale * jax.random.normal(ks[2], (F, F4), jnp.float32),
        "b1": scale * jax.random.normal(ks[3], (1, F4), jnp.float32),
        "w2": scale * jax.random.normal(ks[4], (F4, 1), jnp.float32),
        "b2": scale * jax.random.normal(ks[5], (1, 1), jnp.float32),
    }


def reference_forward(x_nchw, params):
    """Pure-JAX reference (f32 HIGHEST precision to match the kernel accumulation)."""
    N, C_in, H, W = x_nchw.shape
    hi = jax.lax.Precision.HIGHEST
    x_tok = jnp.transpose(x_nchw, (0, 2, 3, 1)).reshape(N, H * W, C_in)
    feat = jnp.maximum(
        jnp.einsum("nsc,cf->nsf", x_tok, params["wenc"], precision=hi)
        + params["benc"], 0.0)
    pooled = jnp.mean(feat, axis=1)                                       # (N, F)
    h = jnp.maximum(jnp.dot(pooled, params["w1"], precision=hi) + params["b1"], 0.0)
    cl = jnp.dot(h, params["w2"], precision=hi) + params["b2"]            # Dropout=id
    return cl, pooled


if __name__ == "__main__":
    key = jax.random.PRNGKey(0)
    k_x, k_p = jax.random.split(key)

    N, C_in, H, W = 2, 4, 16, 16
    bottleneck_features = 32

    x = jax.random.normal(k_x, (N, C_in, H, W), jnp.float32)
    params = init_params(k_p, C_in, bottleneck_features)

    cl_out, pooled = dafl_fas_mixup_forward(x, params)
    cl_out = jax.block_until_ready(cl_out)
    pooled = jax.block_until_ready(pooled)

    cl_ref, pooled_ref = reference_forward(x, params)
    assert cl_out.shape == (N, 1) and pooled.shape == (N, bottleneck_features)
    assert jnp.allclose(cl_out, cl_ref, atol=1e-5, rtol=1e-5)
    assert jnp.allclose(pooled, pooled_ref, atol=1e-5, rtol=1e-5)

    print("KERNEL_OK")
</pallas_src>

<mosaic_0001>
module attributes {stable_mosaic.version = 11 : i64} {
  func.func @kernel(%arg0: i32, %arg1: memref<2x1024xf32, #tpu.memory_space<vmem>>, %arg2: memref<32x4xf32, #tpu.memory_space<vmem>>, %arg3: memref<32x1xf32, #tpu.memory_space<vmem>>, %arg4: memref<32x8xf32, #tpu.memory_space<vmem>>, %arg5: memref<1x8xf32, #tpu.memory_space<vmem>>, %arg6: memref<1x8xf32, #tpu.memory_space<vmem>>, %arg7: memref<1x1xf32, #tpu.memory_space<vmem>>, %arg8: memref<2x1xf32, #tpu.memory_space<vmem>>, %arg9: memref<2x32xf32, #tpu.memory_space<vmem>>) attributes {dimension_semantics = [#tpu.dimension_semantics<parallel>], iteration_bounds = array<i64: 1>, scalar_prefetch = 0 : i64, scratch_operands = 0 : i64, tpu.core_type = #tpu.core_type<tc>, window_params = [{transform_indices = @transform_0, window_bounds = array<i64: 2, 1024>}, {pipeline_mode = #tpu.pipeline_mode<synchronous>, transform_indices = @transform_1, window_bounds = array<i64: 32, 4>}, {pipeline_mode = #tpu.pipeline_mode<synchronous>, transform_indices = @transform_2, window_bounds = array<i64: 32, 1>}, {pipeline_mode = #tpu.pipeline_mode<synchronous>, transform_indices = @transform_3, window_bounds = array<i64: 32, 8>}, {pipeline_mode = #tpu.pipeline_mode<synchronous>, transform_indices = @transform_4, window_bounds = array<i64: 1, 8>}, {pipeline_mode = #tpu.pipeline_mode<synchronous>, transform_indices = @transform_5, window_bounds = array<i64: 1, 8>}, {pipeline_mode = #tpu.pipeline_mode<synchronous>, transform_indices = @transform_6, window_bounds = array<i64: 1, 1>}, {transform_indices = @transform_7, window_bounds = array<i64: 2, 1>}, {transform_indices = @transform_8, window_bounds = array<i64: 2, 32>}]} {
    %c0 = arith.constant 0 : index
    %c0_0 = arith.constant 0 : index
    %0 = vector.load %arg2[%c0, %c0_0] : memref<32x4xf32, #tpu.memory_space<vmem>>, vector<32x4xf32>
    %c0_1 = arith.constant 0 : index
    %c0_2 = arith.constant 0 : index
    %1 = vector.load %arg3[%c0_1, %c0_2] : memref<32x1xf32, #tpu.memory_space<vmem>>, vector<32x1xf32>
    %cst = arith.constant 0.000000e+00 : f32
    %2 = vector.broadcast %cst : f32 to vector<2x32xf32>
    %c0_3 = arith.constant 0 : index
    %c0_4 = arith.constant 0 : index
    %3 = vector.load %arg1[%c0_3, %c0_4] : memref<2x1024xf32, #tpu.memory_space<vmem>>, vector<2x256xf32>
    %4 = vector.extract_strided_slice %0 {offsets = [0, 0], sizes = [32, 1], strides = [1, 1]} : vector<32x4xf32> to vector<32x1xf32>
    %5 = vector.shape_cast %3 : vector<2x256xf32> to vector<2x1x256xf32>
    %6 = vector.shape_cast %4 : vector<32x1xf32> to vector<1x32x1xf32>
    %7 = vector.broadcast %6 : vector<1x32x1xf32> to vector<2x32x256xf32>
    %8 = vector.broadcast %5 : vector<2x1x256xf32> to vector<2x32x256xf32>
    %9 = arith.mulf %7, %8 : vector<2x32x256xf32>
    %c0_5 = arith.constant 0 : index
    %c256 = arith.constant 256 : index
    %10 = vector.load %arg1[%c0_5, %c256] : memref<2x1024xf32, #tpu.memory_space<vmem>>, vector<2x256xf32>
    %11 = vector.extract_strided_slice %0 {offsets = [0, 1], sizes = [32, 1], strides = [1, 1]} : vector<32x4xf32> to vector<32x1xf32>
    %12 = vector.shape_cast %10 : vector<2x256xf32> to vector<2x1x256xf32>
    %13 = vector.shape_cast %11 : vector<32x1xf32> to vector<1x32x1xf32>
    %14 = vector.broadcast %13 : vector<1x32x1xf32> to vector<2x32x256xf32>
    %15 = vector.broadcast %12 : vector<2x1x256xf32> to vector<2x32x256xf32>
    %16 = arith.mulf %14, %15 : vector<2x32x256xf32>
    %17 = arith.addf %9, %16 : vector<2x32x256xf32>
    %c0_6 = arith.constant 0 : index
    %c512 = arith.constant 512 : index
    %18 = vector.load %arg1[%c0_6, %c512] : memref<2x1024xf32, #tpu.memory_space<vmem>>, vector<2x256xf32>
    %19 = vector.extract_strided_slice %0 {offsets = [0, 2], sizes = [32, 1], strides = [1, 1]} : vector<32x4xf32> to vector<32x1xf32>
    %20 = vector.shape_cast %18 : vector<2x256xf32> to vector<2x1x256xf32>
    %21 = vector.shape_cast %19 : vector<32x1xf32> to vector<1x32x1xf32>
    %22 = vector.broadcast %21 : vector<1x32x1xf32> to vector<2x32x256xf32>
    %23 = vector.broadcast %20 : vector<2x1x256xf32> to vector<2x32x256xf32>
    %24 = arith.mulf %22, %23 : vector<2x32x256xf32>
    %25 = arith.addf %17, %24 : vector<2x32x256xf32>
    %c0_7 = arith.constant 0 : index
    %c768 = arith.constant 768 : index
    %26 = vector.load %arg1[%c0_7, %c768] : memref<2x1024xf32, #tpu.memory_space<vmem>>, vector<2x256xf32>
    %27 = vector.extract_strided_slice %0 {offsets = [0, 3], sizes = [32, 1], strides = [1, 1]} : vector<32x4xf32> to vector<32x1xf32>
    %28 = vector.shape_cast %26 : vector<2x256xf32> to vector<2x1x256xf32>
    %29 = vector.shape_cast %27 : vector<32x1xf32> to vector<1x32x1xf32>
    %30 = vector.broadcast %29 : vector<1x32x1xf32> to vector<2x32x256xf32>
    %31 = vector.broadcast %28 : vector<2x1x256xf32> to vector<2x32x256xf32>
    %32 = arith.mulf %30, %31 : vector<2x32x256xf32>
    %33 = arith.addf %25, %32 : vector<2x32x256xf32>
    %34 = vector.shape_cast %1 : vector<32x1xf32> to vector<1x32x1xf32>
    %35 = vector.broadcast %34 : vector<1x32x1xf32> to vector<2x32x256xf32>
    %36 = arith.addf %33, %35 : vector<2x32x256xf32>
    %cst_8 = arith.constant 0.000000e+00 : f32
    %37 = vector.broadcast %cst_8 : f32 to vector<2x32x256xf32>
    %38 = arith.maximumf %36, %37 : vector<2x32x256xf32>
    %cst_9 = arith.constant dense<0.000000e+00> : vector<2x32xf32>
    %39 = vector.multi_reduction <add>, %38, %cst_9 [2] : vector<2x32x256xf32> to vector<2x32xf32>
    %40 = arith.addf %2, %39 : vector<2x32xf32>
    %cst_10 = arith.constant 3.906250e-03 : f32
    %41 = vector.broadcast %cst_10 : f32 to vector<2x32xf32>
    %42 = arith.mulf %40, %41 : vector<2x32xf32>
    %c0_11 = arith.constant 0 : index
    %c0_12 = arith.constant 0 : index
    %43 = vector.load %arg9[%c0_11, %c0_12] : memref<2x32xf32, #tpu.memory_space<vmem>>, vector<2x32xf32>
    tpu.vector_store %arg9[%c0_11, %c0_12], %42 {strides = array<i32>} : memref<2x32xf32, #tpu.memory_space<vmem>>, vector<2x32xf32>,
    %c0_13 = arith.constant 0 : index
    %c0_14 = arith.constant 0 : index
    %44 = vector.load %arg4[%c0_13, %c0_14] : memref<32x8xf32, #tpu.memory_space<vmem>>, vector<32x8xf32>
    %cst_15 = arith.constant dense<0.000000e+00> : vector<2x8xf32>
    %45 = tpu.matmul %42, %44, %cst_15 {dimension_numbers = #tpu.dot_dimension_numbers<[1], [0], [0], [1], [0, 0, 1, 1], [], []>} : vector<2x32xf32>, vector<32x8xf32>, vector<2x8xf32> -> vector<2x8xf32>
    %c0_16 = arith.constant 0 : index
    %c0_17 = arith.constant 0 : index
    %46 = vector.load %arg5[%c0_16, %c0_17] : memref<1x8xf32, #tpu.memory_space<vmem>>, vector<1x8xf32>
    %47 = vector.broadcast %46 : vector<1x8xf32> to vector<2x8xf32>
    %48 = arith.addf %45, %47 : vector<2x8xf32>
    %cst_18 = arith.constant 0.000000e+00 : f32
    %49 = vector.broadcast %cst_18 : f32 to vector<2x8xf32>
    %50 = arith.maximumf %48, %49 : vector<2x8xf32>
    %c0_19 = arith.constant 0 : index
    %c0_20 = arith.constant 0 : index
    %51 = vector.load %arg6[%c0_19, %c0_20] : memref<1x8xf32, #tpu.memory_space<vmem>>, vector<1x8xf32>
    %52 = vector.broadcast %51 : vector<1x8xf32> to vector<2x8xf32>
    %53 = arith.mulf %50, %52 : vector<2x8xf32>
    %cst_21 = arith.constant dense<0.000000e+00> : vector<2xf32>
    %54 = vector.multi_reduction <add>, %53, %cst_21 [1] : vector<2x8xf32> to vector<2xf32>
    %55 = vector.shape_cast %54 : vector<2xf32> to vector<2x1xf32>
    %c0_22 = arith.constant 0 : index
    %c0_23 = arith.constant 0 : index
    %56 = vector.load %arg7[%c0_22, %c0_23] : memref<1x1xf32, #tpu.memory_space<vmem>>, vector<1x1xf32>
    %57 = vector.broadcast %56 : vector<1x1xf32> to vector<2x1xf32>
    %58 = arith.addf %55, %57 : vector<2x1xf32>
    %c0_24 = arith.constant 0 : index
    %c0_25 = arith.constant 0 : index
    %59 = vector.load %arg8[%c0_24, %c0_25] : memref<2x1xf32, #tpu.memory_space<vmem>>, vector<2x1xf32>
    tpu.vector_store %arg8[%c0_24, %c0_25], %58 {strides = array<i32>} : memref<2x1xf32, #tpu.memory_space<vmem>>, vector<2x1xf32>,
    return
  }
  func.func @transform_0(%arg0: i32) -> (i32, i32) {
    %c0_i32 = arith.constant 0 : i32
    %c0_i32_0 = arith.constant 0 : i32
    return %arg0, %c0_i32 : i32, i32
  }
  func.func @transform_1(%arg0: i32) -> (i32, i32) {
    %c0_i32 = arith.constant 0 : i32
    %c0_i32_0 = arith.constant 0 : i32
    %c0_i32_1 = arith.constant 0 : i32
    return %c0_i32, %c0_i32_0 : i32, i32
  }
  func.func @transform_2(%arg0: i32) -> (i32, i32) {
    %c0_i32 = arith.constant 0 : i32
    %c0_i32_0 = arith.constant 0 : i32
    %c0_i32_1 = arith.constant 0 : i32
    return %c0_i32, %c0_i32_0 : i32, i32
  }
  func.func @transform_3(%arg0: i32) -> (i32, i32) {
    %c0_i32 = arith.constant 0 : i32
    %c0_i32_0 = arith.constant 0 : i32
    %c0_i32_1 = arith.constant 0 : i32
    return %c0_i32, %c0_i32_0 : i32, i32
  }
  func.func @transform_4(%arg0: i32) -> (i32, i32) {
    %c0_i32 = arith.constant 0 : i32
    %c0_i32_0 = arith.constant 0 : i32
    %c0_i32_1 = arith.constant 0 : i32
    return %c0_i32, %c0_i32_0 : i32, i32
  }
  func.func @transform_5(%arg0: i32) -> (i32, i32) {
    %c0_i32 = arith.constant 0 : i32
    %c0_i32_0 = arith.constant 0 : i32
    %c0_i32_1 = arith.constant 0 : i32
    return %c0_i32, %c0_i32_0 : i32, i32
  }
  func.func @transform_6(%arg0: i32) -> (i32, i32) {
    %c0_i32 = arith.constant 0 : i32
    %c0_i32_0 = arith.constant 0 : i32
    %c0_i32_1 = arith.constant 0 : i32
    return %c0_i32, %c0_i32_0 : i32, i32
  }
  func.func @transform_7(%arg0: i32) -> (i32, i32) {
    %c0_i32 = arith.constant 0 : i32
    %c0_i32_0 = arith.constant 0 : i32
    return %arg0, %c0_i32 : i32, i32
  }
  func.func @transform_8(%arg0: i32) -> (i32, i32) {
    %c0_i32 = arith.constant 0 : i32
    %c0_i32_0 = arith.constant 0 : i32
    return %arg0, %c0_i32 : i32, i32
  }
}

</mosaic_0001>

<llo_original>
// kernel: tpu_custom_call.1
$region0: #{tpu_custom_call.1}
  #allocation0 [shape = 'u32[]', space=smem, size = 0x4, offset = 0x4, fixed_abs, tag = 'smem constant byte address 0x4 - core index']
  #allocation1 [shape = 'u32[144,128]{1,0:T(1,128)}', space=vmem, size = 0x12000, scoped, tag = 'internal scratch']
  #allocation2 [shape = 'f32[1,1]{1,0:T(1,128)S(1)}', space=vmem, size = 0x200, scoped, tag = 'scoped memory for tpu_custom_call.1']
  %s0 = inlined_call_operand.vmem [shape: f32[2,1024], index: 0, kind: input, shape index: {}]
  %s1 = inlined_call_operand.vmem [shape: f32[32,4], index: 1, kind: input, shape index: {}]
  %s2 = inlined_call_operand.vmem [shape: f32[32,1], index: 2, kind: input, shape index: {}]
  %s3 = inlined_call_operand.vmem [shape: f32[32,8], index: 3, kind: input, shape index: {}]
  %s4 = inlined_call_operand.vmem [shape: f32[1,8], index: 4, kind: input, shape index: {}]
  %s5 = inlined_call_operand.vmem [shape: f32[1,8], index: 5, kind: input, shape index: {}]
  %s6 = inlined_call_operand.<no memory space> [shape: f32[1,1], index: 6, kind: input, shape index: {}]
  %s7 = inlined_call_operand.vmem [shape: f32[2,1], index: 7, kind: output, shape index: {0}]
  %s8 = inlined_call_operand.hbm [shape: f32[2,32], index: 8, kind: output, shape index: {1}]
  %9 = xla_tuple %s7, %s8
  %s10 = sld [smem:[#allocation0]]
  $region46: #{tpu_custom_call.1} parent=0
    _
  %s12 = ssub.s32 1, %s10
  %s13 = scalar_select 0, %s12, %s10
  %v14 = vstv %s6
  %15 = vst [vmem:[#allocation2] sm:$0x1] %v14
  $region1: #{tpu_custom_call.1} parent=0
    #allocation3 [shape = 'u8[1024]{0}', space=vmem, size = 0x400, scoped, tag = 'output window, operand 1, single buffered']
    #allocation4 [shape = 's32[1]{0}', space=sflag, size = 0x4, scoped, tag = 'scoped memory for tpu_custom_call.1']
    %16 = vsyncpa [#allocation4], 0
    // Predicated region
    $region2: #{tpu_custom_call.1} parent=1 // pred_check
      _
    $region3: #{tpu_custom_call.1} parent=1 // pred_check_branch
      %18 = sbr.rel (0) target = $region5
    $region4: #{tpu_custom_call.1} parent=1 // pred_region
      _
    $region5: #{tpu_custom_call.1} parent=1 // pred_fallthru
      _
    // Predicated region
    $region6: #{tpu_custom_call.1} parent=1 // pred_check
      _
    $region7: #{tpu_custom_call.1} parent=1 // pred_check_branch
      %20 = sbr.rel (0) target = $region9
    $region8: #{tpu_custom_call.1} parent=1 // pred_region
      _
    $region9: #{tpu_custom_call.1} parent=1 // pred_fallthru
      _
    // Predicated region
    $region10: #{tpu_custom_call.1} parent=1 // pred_check
      _
    $region11: #{tpu_custom_call.1} parent=1 // pred_check_branch
      %22 = sbr.rel (0) target = $region13
    $region12: #{tpu_custom_call.1} parent=1 // pred_region
      _
    $region13: #{tpu_custom_call.1} parent=1 // pred_fallthru
      _
    // Predicated region
    $region14: #{tpu_custom_call.1} parent=1 // pred_check
      _
    $region15: #{tpu_custom_call.1} parent=1 // pred_check_branch
      %24 = sbr.rel (0) target = $region17
    $region16: #{tpu_custom_call.1} parent=1 // pred_region
      _
    $region17: #{tpu_custom_call.1} parent=1 // pred_fallthru
      _
    // Predicated region
    $region18: #{tpu_custom_call.1} parent=1 // pred_check
      _
    $region19: #{tpu_custom_call.1} parent=1 // pred_check_branch
      %26 = sbr.rel (0) target = $region21
    $region20: #{tpu_custom_call.1} parent=1 // pred_region
      _
    $region21: #{tpu_custom_call.1} parent=1 // pred_fallthru
      _
    // Predicated region
    $region22: #{tpu_custom_call.1} parent=1 // pred_check
      _
    $region23: #{tpu_custom_call.1} parent=1 // pred_check_branch
      %28 = sbr.rel (0) target = $region25
    $region24: #{tpu_custom_call.1} parent=1 // pred_region
      _
    $region25: #{tpu_custom_call.1} parent=1 // pred_fallthru
      _
    // Predicated region
    $region26: #{tpu_custom_call.1} parent=1 // pred_check
      _
    $region27: #{tpu_custom_call.1} parent=1 // pred_check_branch
      %30 = sbr.rel (0) target = $region29
    $region28: #{tpu_custom_call.1} parent=1 // pred_region
      _
    $region29: #{tpu_custom_call.1} parent=1 // pred_fallthru
      _
    %v31 = vld [vmem:[%s1] sm:$0xff]
    %v32 = vld [vmem:[%s1 + $0x8] sm:$0xff]
    %v33 = vld [vmem:[%s1 + $0x10] sm:$0xff]
    %v34 = vld [vmem:[%s1 + $0x18] sm:$0xff]
    %v35 = vld [vmem:[%s2] sm:$0xff]
    %v36 = vld [vmem:[%s2 + $0x8] sm:$0xff]
    %v37 = vld [vmem:[%s2 + $0x10] sm:$0xff]
    %v38 = vld [vmem:[%s2 + $0x18] sm:$0xff]
    %v39 = vld [vmem:[%s0] sm:$0xf]
    %v42 = vunpack.c.l.s4 1966171168
    %v43 = vunpack.c.0.s8 %v42
    %v44 = vlaneseq
    %v45 = vshrl.u32 %v44, 7
    %v46 = vsub.s32 %v43, %v45
    %v47 = vrot.slane %v39, %v46
    %v48 = vcombine.high %v47, %v47
    %50 = vset.pattern.permute.xlu0 0
    %51 = vperm.xlu0 %50, %v31
    %v52 = vpop.permute.xlu0 %51
    %55 = vset.pattern.permute.xlu0 0
    %56 = vperm.xlu0 %55, %v32
    %v57 = vpop.permute.xlu0 %56
    %60 = vset.pattern.permute.xlu0 0
    %61 = vperm.xlu0 %60, %v33
    %v62 = vpop.permute.xlu0 %61
    %65 = vset.pattern.permute.xlu0 0
    %66 = vperm.xlu0 %65, %v34
    %v67 = vpop.permute.xlu0 %66
    %v69 = vlaneseq
    %v70 = vshrl.u32 %v69, 7
    %v71 = vsub.s32 0, %v70
    %v72 = vrot.slane %v47, %v71
    %v73 = vlaneseq
    %v74 = vshrl.u32 %v73, 7
    %v75 = vsub.s32 1, %v74
    %v76 = vrot.slane %v47, %v75
    %v77 = vlaneseq
    %v78 = vshrl.u32 %v77, 7
    %v79 = vsub.s32 0, %v78
    %v80 = vrot.slane %v48, %v79
    %v81 = vlaneseq
    %v82 = vshrl.u32 %v81, 7
    %v83 = vsub.s32 1, %v82
    %v84 = vrot.slane %v48, %v83
    %v89 = vmul.f32 %v52, %v72
    %v90 = vmul.f32 %v52, %v76
    %v91 = vmul.f32 %v57, %v72
    %v92 = vmul.f32 %v57, %v76
    %v93 = vmul.f32 %v62, %v72
    %v94 = vmul.f32 %v62, %v76
    %v95 = vmul.f32 %v67, %v72
    %v96 = vmul.f32 %v67, %v76
    %v97 = vmul.f32 %v52, %v80
    %v98 = vmul.f32 %v52, %v84
    %v99 = vmul.f32 %v57, %v80
    %v100 = vmul.f32 %v57, %v84
    %v101 = vmul.f32 %v62, %v80
    %v102 = vmul.f32 %v62, %v84
    %v103 = vmul.f32 %v67, %v80
    %v104 = vmul.f32 %v67, %v84
    %v105 = vld [vmem:[%s0 + $0x4] sm:$0xf]
    %v108 = vunpack.c.l.s4 1966171168
    %v109 = vunpack.c.0.s8 %v108
    %v110 = vlaneseq
    %v111 = vshrl.u32 %v110, 7
    %v112 = vsub.s32 %v109, %v111
    %v113 = vrot.slane %v105, %v112
    %v114 = vcombine.high %v113, %v113
    %115 = vset.pattern.permute.xlu0 1
    %116 = vperm.xlu0 %115, %v31
    %v117 = vpop.permute.xlu0 %116
    %119 = vset.pattern.permute.xlu0 1
    %120 = vperm.xlu0 %119, %v32
    %v121 = vpop.permute.xlu0 %120
    %123 = vset.pattern.permute.xlu0 1
    %124 = vperm.xlu0 %123, %v33
    %v125 = vpop.permute.xlu0 %124
    %127 = vset.pattern.permute.xlu0 1
    %128 = vperm.xlu0 %127, %v34
    %v129 = vpop.permute.xlu0 %128
    %v131 = vlaneseq
    %v132 = vshrl.u32 %v131, 7
    %v133 = vsub.s32 0, %v132
    %v134 = vrot.slane %v113, %v133
    %v135 = vlaneseq
    %v136 = vshrl.u32 %v135, 7
    %v137 = vsub.s32 1, %v136
    %v138 = vrot.slane %v113, %v137
    %v139 = vlaneseq
    %v140 = vshrl.u32 %v139, 7
    %v141 = vsub.s32 0, %v140
    %v142 = vrot.slane %v114, %v141
    %v143 = vlaneseq
    %v144 = vshrl.u32 %v143, 7
    %v145 = vsub.s32 1, %v144
    %v146 = vrot.slane %v114, %v145
    %v151 = vmul.f32 %v117, %v134
    %v152 = vmul.f32 %v117, %v138
    %v153 = vmul.f32 %v121, %v134
    %v154 = vmul.f32 %v121, %v138
    %v155 = vmul.f32 %v125, %v134
    %v156 = vmul.f32 %v125, %v138
    %v157 = vmul.f32 %v129, %v134
    %v158 = vmul.f32 %v129, %v138
    %v159 = vmul.f32 %v117, %v142
    %v160 = vmul.f32 %v117, %v146
    %v161 = vmul.f32 %v121, %v142
    %v162 = vmul.f32 %v121, %v146
    %v163 = vmul.f32 %v125, %v142
    %v164 = vmul.f32 %v125, %v146
    %v165 = vmul.f32 %v129, %v142
    %v166 = vmul.f32 %v129, %v146
    %v167 = vadd.f32 %v89, %v151
    %v168 = vadd.f32 %v90, %v152
    %v169 = vadd.f32 %v91, %v153
    %v170 = vadd.f32 %v92, %v154
    %v171 = vadd.f32 %v93, %v155
    %v172 = vadd.f32 %v94, %v156
    %v173 = vadd.f32 %v95, %v157
    %v174 = vadd.f32 %v96, %v158
    %v175 = vadd.f32 %v97, %v159
    %v176 = vadd.f32 %v98, %v160
    %v177 = vadd.f32 %v99, %v161
    %v178 = vadd.f32 %v100, %v162
    %v179 = vadd.f32 %v101, %v163
    %v180 = vadd.f32 %v102, %v164
    %v181 = vadd.f32 %v103, %v165
    %v182 = vadd.f32 %v104, %v166
    %v183 = vld [vmem:[%s0 + $0x8] sm:$0xf]
    %v186 = vunpack.c.l.s4 1966171168
    %v187 = vunpack.c.0.s8 %v186
    %v188 = vlaneseq
    %v189 = vshrl.u32 %v188, 7
    %v190 = vsub.s32 %v187, %v189
    %v191 = vrot.slane %v183, %v190
    %v192 = vcombine.high %v191, %v191
    %193 = vset.pattern.permute.xlu0 2
    %194 = vperm.xlu0 %193, %v31
    %v195 = vpop.permute.xlu0 %194
    %197 = vset.pattern.permute.xlu0 2
    %198 = vperm.xlu0 %197, %v32
    %v199 = vpop.permute.xlu0 %198
    %201 = vset.pattern.permute.xlu0 2
    %202 = vperm.xlu0 %201, %v33
    %v203 = vpop.permute.xlu0 %202
    %205 = vset.pattern.permute.xlu0 2
    %206 = vperm.xlu0 %205, %v34
    %v207 = vpop.permute.xlu0 %206
    %v209 = vlaneseq
    %v210 = vshrl.u32 %v209, 7
    %v211 = vsub.s32 0, %v210
    %v212 = vrot.slane %v191, %v211
    %v213 = vlaneseq
    %v214 = vshrl.u32 %v213, 7
    %v215 = vsub.s32 1, %v214
    %v216 = vrot.slane %v191, %v215
    %v217 = vlaneseq
    %v218 = vshrl.u32 %v217, 7
    %v219 = vsub.s32 0, %v218
    %v220 = vrot.slane %v192, %v219
    %v221 = vlaneseq
    %v222 = vshrl.u32 %v221, 7
    %v223 = vsub.s32 1, %v222
    %v224 = vrot.slane %v192, %v223
    %v229 = vmul.f32 %v195, %v212
    %v230 = vmul.f32 %v195, %v216
    %v231 = vmul.f32 %v199, %v212
    %v232 = vmul.f32 %v199, %v216
    %v233 = vmul.f32 %v203, %v212
    %v234 = vmul.f32 %v203, %v216
    %v235 = vmul.f32 %v207, %v212
    %v236 = vmul.f32 %v207, %v216
    %v237 = vmul.f32 %v195, %v220
    %v238 = vmul.f32 %v195, %v224
    %v239 = vmul.f32 %v199, %v220
    %v240 = vmul.f32 %v199, %v224
    %v241 = vmul.f32 %v203, %v220
    %v242 = vmul.f32 %v203, %v224
    %v243 = vmul.f32 %v207, %v220
    %v244 = vmul.f32 %v207, %v224
    %v245 = vadd.f32 %v167, %v229
    %v246 = vadd.f32 %v168, %v230
    %v247 = vadd.f32 %v169, %v231
    %v248 = vadd.f32 %v170, %v232
    %v249 = vadd.f32 %v171, %v233
    %v250 = vadd.f32 %v172, %v234
    %v251 = vadd.f32 %v173, %v235
    %v252 = vadd.f32 %v174, %v236
    %v253 = vadd.f32 %v175, %v237
    %v254 = vadd.f32 %v176, %v238
    %v255 = vadd.f32 %v177, %v239
    %v256 = vadd.f32 %v178, %v240
    %v257 = vadd.f32 %v179, %v241
    %v258 = vadd.f32 %v180, %v242
    %v259 = vadd.f32 %v181, %v243
    %v260 = vadd.f32 %v182, %v244
    %v261 = vld [vmem:[%s0 + $0xc] sm:$0xf]
    %v264 = vunpack.c.l.s4 1966171168
    %v265 = vunpack.c.0.s8 %v264
    %v266 = vlaneseq
    %v267 = vshrl.u32 %v266, 7
    %v268 = vsub.s32 %v265, %v267
    %v269 = vrot.slane %v261, %v268
    %v270 = vcombine.high %v269, %v269
    %271 = vset.pattern.permute.xlu0 3
    %272 = vperm.xlu0 %271, %v31
    %v273 = vpop.permute.xlu0 %272
    %275 = vset.pattern.permute.xlu0 3
    %276 = vperm.xlu0 %275, %v32
    %v277 = vpop.permute.xlu0 %276
    %279 = vset.pattern.permute.xlu0 3
    %280 = vperm.xlu0 %279, %v33
    %v281 = vpop.permute.xlu0 %280
    %283 = vset.pattern.permute.xlu0 3
    %284 = vperm.xlu0 %283, %v34
    %v285 = vpop.permute.xlu0 %284
    %v287 = vlaneseq
    %v288 = vshrl.u32 %v287, 7
    %v289 = vsub.s32 0, %v288
    %v290 = vrot.slane %v269, %v289
    %v291 = vlaneseq
    %v292 = vshrl.u32 %v291, 7
    %v293 = vsub.s32 1, %v292
    %v294 = vrot.slane %v269, %v293
    %v295 = vlaneseq
    %v296 = vshrl.u32 %v295, 7
    %v297 = vsub.s32 0, %v296
    %v298 = vrot.slane %v270, %v297
    %v299 = vlaneseq
    %v300 = vshrl.u32 %v299, 7
    %v301 = vsub.s32 1, %v300
    %v302 = vrot.slane %v270, %v301
    %v307 = vmul.f32 %v273, %v290
    %v308 = vmul.f32 %v273, %v294
    %v309 = vmul.f32 %v277, %v290
    %v310 = vmul.f32 %v277, %v294
    %v311 = vmul.f32 %v281, %v290
    %v312 = vmul.f32 %v281, %v294
    %v313 = vmul.f32 %v285, %v290
    %v314 = vmul.f32 %v285, %v294
    %v315 = vmul.f32 %v273, %v298
    %v316 = vmul.f32 %v273, %v302
    %v317 = vmul.f32 %v277, %v298
    %v318 = vmul.f32 %v277, %v302
    %v319 = vmul.f32 %v281, %v298
    %v320 = vmul.f32 %v281, %v302
    %v321 = vmul.f32 %v285, %v298
    %v322 = vmul.f32 %v285, %v302
    %v323 = vadd.f32 %v245, %v307
    %v324 = vadd.f32 %v246, %v308
    %v325 = vadd.f32 %v247, %v309
    %v326 = vadd.f32 %v248, %v310
    %v327 = vadd.f32 %v249, %v311
    %v328 = vadd.f32 %v250, %v312
    %v329 = vadd.f32 %v251, %v313
    %v330 = vadd.f32 %v252, %v314
    %v331 = vadd.f32 %v253, %v315
    %v332 = vadd.f32 %v254, %v316
    %v333 = vadd.f32 %v255, %v317
    %v334 = vadd.f32 %v256, %v318
    %v335 = vadd.f32 %v257, %v319
    %v336 = vadd.f32 %v258, %v320
    %v337 = vadd.f32 %v259, %v321
    %v338 = vadd.f32 %v260, %v322
    %340 = vset.pattern.permute.xlu0 0
    %341 = vperm.xlu0 %340, %v35
    %v342 = vpop.permute.xlu0 %341
    %345 = vset.pattern.permute.xlu0 0
    %346 = vperm.xlu0 %345, %v36
    %v347 = vpop.permute.xlu0 %346
    %350 = vset.pattern.permute.xlu0 0
    %351 = vperm.xlu0 %350, %v37
    %v352 = vpop.permute.xlu0 %351
    %355 = vset.pattern.permute.xlu0 0
    %356 = vperm.xlu0 %355, %v38
    %v357 = vpop.permute.xlu0 %356
    %v359 = vadd.f32 %v323, %v342
    %v360 = vadd.f32 %v324, %v342
    %v361 = vadd.f32 %v325, %v347
    %v362 = vadd.f32 %v326, %v347
    %v363 = vadd.f32 %v327, %v352
    %v364 = vadd.f32 %v328, %v352
    %v365 = vadd.f32 %v329, %v357
    %v366 = vadd.f32 %v330, %v357
    %v367 = vadd.f32 %v331, %v342
    %v368 = vadd.f32 %v332, %v342
    %v369 = vadd.f32 %v333, %v347
    %v370 = vadd.f32 %v334, %v347
    %v371 = vadd.f32 %v335, %v352
    %v372 = vadd.f32 %v336, %v352
    %v373 = vadd.f32 %v337, %v357
    %v374 = vadd.f32 %v338, %v357
    %v375 = vmax.f32 %v359, 0.0
    %v376 = vmax.f32 %v360, 0.0
    %v377 = vmax.f32 %v361, 0.0
    %v378 = vmax.f32 %v362, 0.0
    %v379 = vmax.f32 %v363, 0.0
    %v380 = vmax.f32 %v364, 0.0
    %v381 = vmax.f32 %v365, 0.0
    %v382 = vmax.f32 %v366, 0.0
    %v383 = vmax.f32 %v367, 0.0
    %v384 = vmax.f32 %v368, 0.0
    %v385 = vmax.f32 %v369, 0.0
    %v386 = vmax.f32 %v370, 0.0
    %v387 = vmax.f32 %v371, 0.0
    %v388 = vmax.f32 %v372, 0.0
    %v389 = vmax.f32 %v373, 0.0
    %v390 = vmax.f32 %v374, 0.0
    %v391 = vadd.f32 %v375, %v376
    %392 = vadd.xlane.f32.xlu0 %v391
    %v393 = vpop.xlane.xlu0 %392
    %v394 = vadd.f32 %v377, %v378
    %395 = vadd.xlane.f32.xlu0 %v394
    %v396 = vpop.xlane.xlu0 %395
    %v397 = vadd.f32 %v379, %v380
    %398 = vadd.xlane.f32.xlu0 %v397
    %v399 = vpop.xlane.xlu0 %398
    %v400 = vadd.f32 %v381, %v382
    %401 = vadd.xlane.f32.xlu0 %v400
    %v402 = vpop.xlane.xlu0 %401
    %v403 = vadd.f32 %v383, %v384
    %404 = vadd.xlane.f32.xlu0 %v403
    %v405 = vpop.xlane.xlu0 %404
    %v406 = vadd.f32 %v385, %v386
    %407 = vadd.xlane.f32.xlu0 %v406
    %v408 = vpop.xlane.xlu0 %407
    %v409 = vadd.f32 %v387, %v388
    %410 = vadd.xlane.f32.xlu0 %v409
    %v411 = vpop.xlane.xlu0 %410
    %v412 = vadd.f32 %v389, %v390
    %413 = vadd.xlane.f32.xlu0 %v412
    %v414 = vpop.xlane.xlu0 %413
    %v415 = vadd.f32 %v393, 0.0
    %v416 = vadd.f32 %v396, 0.0
    %v417 = vadd.f32 %v399, 0.0
    %v418 = vadd.f32 %v402, 0.0
    %v419 = vadd.f32 %v405, 0.0
    %v420 = vadd.f32 %v408, 0.0
    %v421 = vadd.f32 %v411, 0.0
    %v422 = vadd.f32 %v414, 0.0
    %v423 = vmul.f32 %v415, 0.00390625
    %v424 = vmul.f32 %v416, 0.00390625
    %v425 = vmul.f32 %v417, 0.00390625
    %v426 = vmul.f32 %v418, 0.00390625
    %v427 = vmul.f32 %v419, 0.00390625
    %v428 = vmul.f32 %v420, 0.00390625
    %v429 = vmul.f32 %v421, 0.00390625
    %v430 = vmul.f32 %v422, 0.00390625
    %v439 = vlaneseq
    %v440 = vand.u32 %v439, 127
    %v441 = vlaneseq
    %v442 = vshrl.u32 %v441, 7
    %v443 = vsub.s32 %v440, %v442
    %v444 = vrot.slane %v423, %v443
    %v445 = vadd.s32 %v440, 4294967288
    %v446 = vlaneseq
    %v447 = vshrl.u32 %v446, 7
    %v448 = vsub.s32 %v445, %v447
    %v449 = vrot.slane %v424, %v448
    %vm450 = vcmask 130112
    %v451 = vsel %vm450, %v449, %v444
    %v452 = vadd.s32 %v440, 4294967280
    %v453 = vlaneseq
    %v454 = vshrl.u32 %v453, 7
    %v455 = vsub.s32 %v452, %v454
    %v456 = vrot.slane %v425, %v455
    %vm457 = vcmask 195712
    %v458 = vsel %vm457, %v456, %v451
    %v459 = vadd.s32 %v440, 4294967272
    %v460 = vlaneseq
    %v461 = vshrl.u32 %v460, 7
    %v462 = vsub.s32 %v459, %v461
    %v463 = vrot.slane %v426, %v462
    %vm464 = vcmask 261312
    %v465 = vsel %vm464, %v463, %v458
    %v466 = vlaneseq
    %v467 = vshrl.u32 %v466, 7
    %v468 = vsub.s32 %v440, %v467
    %v469 = vrot.slane %v427, %v468
    %v470 = vlaneseq
    %v471 = vshrl.u32 %v470, 7
    %v472 = vsub.s32 %v445, %v471
    %v473 = vrot.slane %v428, %v472
    %v474 = vsel %vm450, %v473, %v469
    %v475 = vlaneseq
    %v476 = vshrl.u32 %v475, 7
    %v477 = vsub.s32 %v452, %v476
    %v478 = vrot.slane %v429, %v477
    %v479 = vsel %vm457, %v478, %v474
    %v480 = vlaneseq
    %v481 = vshrl.u32 %v480, 7
    %v482 = vsub.s32 %v459, %v481
    %v483 = vrot.slane %v430, %v482
    %v484 = vsel %vm464, %v483, %v479
    %vm485 = vcmask 1041409
    %v486 = vsel %vm485, %v484, %v465
    %vm488 = vcmask 254976
    %489 = vst.msk [vmem:[#allocation3] sm:$0x3] %vm488, %v486
    %v490 = vld [vmem:[%s3] sm:$0xff]
    %v491 = vld [vmem:[%s3 + $0x8] sm:$0xff]
    %v492 = vld [vmem:[%s3 + $0x10] sm:$0xff]
    %v493 = vld [vmem:[%s3 + $0x18] sm:$0xff]
    %v494 = vld [vmem:[%s4] sm:$0x1]
    %v496 = vlaneseq
    %v497 = vshrl.u32 %v496, 7
    %v498 = vsub.s32 0, %v497
    %v499 = vrot.slane %v494, %v498
    %vm501 = vcmask 261120
    %v502 = vsel %vm501, %v486, 0
    %504 = vmatprep.subr.mxu0 0.0
    %505 = vmatpush1.msra.mxu0 0.0
    %506 = vmatprep.subr.mxu0 0.0
    %507 = vmatpush1.msra.mxu0 0.0
    %508 = vmatprep.subr.mxu0 0.0
    %509 = vmatpush1.msra.mxu0 0.0
    %510 = vmatprep.subr.mxu0 0.0
    %511 = vmatpush1.msra.mxu0 0.0
    %512 = vmatprep.subr.mxu0 0.0
    %513 = vmatpush1.msra.mxu0 0.0
    %514 = vmatprep.subr.mxu0 0.0
    %515 = vmatpush1.msra.mxu0 0.0
    %516 = vmatprep.subr.mxu0 0.0
    %517 = vmatpush1.msra.mxu0 0.0
    %518 = vmatprep.subr.mxu0 0.0
    %519 = vmatpush1.msra.mxu0 0.0
    %520 = vmatprep.subr.mxu0 0.0
    %521 = vmatpush1.msra.mxu0 0.0
    %522 = vmatprep.subr.mxu0 0.0
    %523 = vmatpush1.msra.mxu0 0.0
    %524 = vmatprep.subr.mxu0 0.0
    %525 = vmatpush1.msra.mxu0 0.0
    %526 = vmatprep.subr.mxu0 0.0
    %527 = vmatpush1.msra.mxu0 0.0
    %528 = vmatprep.subr.mxu0 0.0
    %529 = vmatpush1.msra.mxu0 %v493
    %530 = vmatprep.subr.mxu0 0.0
    %531 = vmatpush1.msra.mxu0 %v492
    %532 = vmatprep.subr.mxu0 0.0
    %533 = vmatpush1.msra.mxu0 %v491
    %534 = vmatprep.subr.mxu0 0.0
    %535 = vmatpush1.msra.mxu0 %v490
    %536 = vmatprep.subr.mxu0 0.0
    %537 = vmatpush2.msra.mxu0 0.0
    %538 = vmatprep.subr.mxu0 0.0
    %539 = vmatpush2.msra.mxu0 0.0
    %540 = vmatprep.subr.mxu0 0.0
    %541 = vmatpush2.msra.mxu0 0.0
    %542 = vmatprep.subr.mxu0 0.0
    %543 = vmatpush2.msra.mxu0 0.0
    %544 = vmatprep.subr.mxu0 0.0
    %545 = vmatpush2.msra.mxu0 0.0
    %546 = vmatprep.subr.mxu0 0.0
    %547 = vmatpush2.msra.mxu0 0.0
    %548 = vmatprep.subr.mxu0 0.0
    %549 = vmatpush2.msra.mxu0 0.0
    %550 = vmatprep.subr.mxu0 0.0
    %551 = vmatpush2.msra.mxu0 0.0
    %552 = vmatprep.subr.mxu0 0.0
    %553 = vmatpush2.msra.mxu0 0.0
    %554 = vmatprep.subr.mxu0 0.0
    %555 = vmatpush2.msra.mxu0 0.0
    %556 = vmatprep.subr.mxu0 0.0
    %557 = vmatpush2.msra.mxu0 0.0
    %558 = vmatprep.subr.mxu0 0.0
    %559 = vmatpush2.msra.mxu0 0.0
    %560 = vmatprep.subr.mxu0 0.0
    %561 = vmatpush2.msra.mxu0 0.0
    %562 = vmatprep.subr.mxu0 0.0
    %563 = vmatpush2.msra.mxu0 0.0
    %564 = vmatprep.subr.mxu0 0.0
    %565 = vmatpush2.msra.mxu0 0.0
    %566 = vmatprep.subr.mxu0 0.0
    %567 = vmatpush2.msra.mxu0 0.0
    %568 = vmatprep.mubr.f32.mxu0 0.0
    %569 = vmatmul.mubr.f32.gmra.mxu0 %v502
    %v570 = vpop.f32.mrf.mxu0
    %v571 = vadd.f32 %v499, %v570
    %v572 = vpop.f32.mrf.mxu0
    %573 = vdwg.mxu0
    %v574 = vmax.f32 %v571, 0.0
    %v575 = vld [vmem:[%s5] sm:$0x1]
    %v577 = vlaneseq
    %v578 = vshrl.u32 %v577, 7
    %v579 = vsub.s32 0, %v578
    %v580 = vrot.slane %v575, %v579
    %v582 = vmul.f32 %v574, %v580
    %vm583 = vcmask 58368
    %v584 = vsel %vm583, %v582, 0.0
    %585 = vadd.xlane.f32.xlu0 %v584
    %v586 = vpop.xlane.xlu0 %585
    %v587 = vld [vmem:[#allocation2] sm:$0x1]
    %v589 = vlaneseq
    %v590 = vshrl.u32 %v589, 7
    %v591 = vsub.s32 0, %v590
    %v592 = vrot.slane %v587, %v591
    %v594 = vadd.f32 %v586, %v592
    %vm595 = vcmask 1024
    %596 = vst.msk [vmem:[%s7] sm:$0x3] %vm595, %v594
    // Predicated region
    $region30: #{tpu_custom_call.1} parent=1 // pred_check
      _
    $region31: #{tpu_custom_call.1} parent=1 // pred_check_branch
      %598 = sbr.rel (0) target = $region33
    $region32: #{tpu_custom_call.1} parent=1 // pred_region
      _
    $region33: #{tpu_custom_call.1} parent=1 // pred_fallthru
      _
    // Predicated region
    $region34: #{tpu_custom_call.1} parent=1 // pred_check
      _
    $region35: #{tpu_custom_call.1} parent=1 // pred_check_branch
      %600 = sbr.rel (0) target = $region37
    $region36: #{tpu_custom_call.1} parent=1 // pred_region
      %s602 = ssub.s32 32, 32
      %603 = vsyncadd [#allocation4], %s602
      %s605 = sshll.u32 [#allocation3], 4
      %s606 = int_to_ptr.vmem [resolvable:$true] %s605
      %608 = dma.vmem_to_hbm [thread:$0]  %s606, 32, %s8, [#allocation4]
    $region37: #{tpu_custom_call.1} parent=1 // pred_fallthru
      _
    // Predicated region
    $region38: #{tpu_custom_call.1} parent=1 // pred_check
      _
    $region39: #{tpu_custom_call.1} parent=1 // pred_check_branch
      %610 = sbr.rel (0) target = $region41
    $region40: #{tpu_custom_call.1} parent=1 // pred_region
      _
    $region41: #{tpu_custom_call.1} parent=1 // pred_fallthru
      _
    // Predicated region
    $region42: #{tpu_custom_call.1} parent=1 // pred_check
      _
    $region43: #{tpu_custom_call.1} parent=1 // pred_check_branch
      %612 = sbr.rel (0) target = $region45
    $region44: #{tpu_custom_call.1} parent=1 // pred_region
      %613 = dma.done [#allocation4], 32
    $region45: #{tpu_custom_call.1} parent=1 // pred_fallthru
      _
    %614 = vsyncpa [#allocation4], 1

</llo_original>
